<compile_context>
chip_gen: v6e
topology: v6e:2x2x1
jax: 0.10.0
libtpu: 0.0.40
codegen_flags: <defaults>
</compile_context>

<pallas_src>
import functools
import math

import jax
import jax.numpy as jnp
from jax.experimental import pallas as pl
from jax.experimental.pallas import tpu as pltpu


# ----------------------------------------------------------------------------
# helpers
# ----------------------------------------------------------------------------
def _round_up(v, m):
    return ((v + m - 1) // m) * m


def _pick_tb(T, cap=16):
    """Largest divisor of T that is <= cap (timesteps processed per grid step)."""
    for tb in range(min(T, cap), 0, -1):
        if T % tb == 0:
            return tb
    return 1


def _row_block(M, cap=512):
    """Row-block for the projection matmul: divides M, multiple of 8, <= cap."""
    if M <= cap:
        return M
    best = 8
    for rb in range(8, cap + 1, 8):
        if M % rb == 0:
            best = rb
    return best


# ----------------------------------------------------------------------------
# Input-projection kernels (hoisted out of the recurrence).
#   gi = x @ W + b           (layer 0)
#   gi = xf @ Wf + xb @ Wb + b   (layers >= 1; avoids concat of fwd/bwd slabs)
# Outputs are (rows, 6*H_pad): [fwd r|z|n | bwd r|z|n], lane-dense.
# ----------------------------------------------------------------------------
def _proj1_kernel(x_ref, w_ref, b_ref, o_ref):
    o_ref[...] = (
        jnp.dot(x_ref[...], w_ref[...], preferred_element_type=jnp.float32)
        + b_ref[...]
    )


def _proj2_kernel(xf_ref, xb_ref, wf_ref, wb_ref, b_ref, o_ref):
    o_ref[...] = (
        jnp.dot(xf_ref[...], wf_ref[...], preferred_element_type=jnp.float32)
        + jnp.dot(xb_ref[...], wb_ref[...], preferred_element_type=jnp.float32)
        + b_ref[...]
    )


def _input_projection(xs, ws, b):
    """gi = sum_i xs[i] @ ws[i] + b, tiled over rows. xs[i]: (M, K_i)."""
    M = xs[0].shape[0]
    N = ws[0].shape[1]
    rb = _row_block(M)
    kernel = _proj1_kernel if len(xs) == 1 else _proj2_kernel
    x_specs = [pl.BlockSpec((rb, x.shape[1]), lambda i: (i, 0)) for x in xs]
    w_specs = [pl.BlockSpec(w.shape, lambda i: (0, 0)) for w in ws]
    return pl.pallas_call(
        kernel,
        out_shape=jax.ShapeDtypeStruct((M, N), jnp.float32),
        grid_spec=pltpu.PrefetchScalarGridSpec(
            num_scalar_prefetch=0,
            grid=(M // rb,),
            in_specs=x_specs + w_specs + [pl.BlockSpec((1, N), lambda i: (0, 0))],
            out_specs=pl.BlockSpec((rb, N), lambda i: (i, 0)),
        ),
        compiler_params=pltpu.CompilerParams(dimension_semantics=("parallel",)),
    )(*xs, *ws, b)


# ----------------------------------------------------------------------------
# Fused bidirectional GRU layer kernel.
#   grid over time blocks; fwd consumes block s, bwd consumes block nT-1-s
#   (time reversal purely via index_map).  Hidden states carried in VMEM
#   scratch.  Per timestep & direction: one fused (B, Hp) x (Hp, 3*Hp) dot.
# ----------------------------------------------------------------------------
def _bigru_layer_kernel(gi_f_ref, gi_b_ref, whh_f_ref, whh_b_ref,
                        bhn_f_ref, bhn_b_ref,
                        out_f_ref, out_b_ref, hn_ref,
                        h_f, h_b, *, tb, hp):
    @pl.when(pl.program_id(0) == 0)
    def _():
        h_f[...] = jnp.zeros_like(h_f)
        h_b[...] = jnp.zeros_like(h_b)

    whh_f = whh_f_ref[...]
    whh_b = whh_b_ref[...]
    bhn_f = bhn_f_ref[...]
    bhn_b = bhn_b_ref[...]

    def gru_step(gi, h_prev, whh, bhn):
        # gi already contains x@W_ih + b_ih (+ b_hh folded for r/z gates).
        gh = jnp.dot(h_prev, whh, preferred_element_type=jnp.float32)
        r = jax.nn.sigmoid(gi[:, :hp] + gh[:, :hp])
        z = jax.nn.sigmoid(gi[:, hp:2 * hp] + gh[:, hp:2 * hp])
        n = jnp.tanh(gi[:, 2 * hp:] + r * (gh[:, 2 * hp:] + bhn))
        return (1.0 - z) * n + z * h_prev

    # tb is a small static constant: this Python loop is the fully unrolled
    # equivalent of lax.fori_loop(..., unroll=True), with static indices.
    for i in range(tb):
        h_new_f = gru_step(gi_f_ref[i], h_f[...], whh_f, bhn_f)
        h_f[...] = h_new_f
        out_f_ref[i] = h_new_f

        j = tb - 1 - i            # backward walks this block in reverse time
        h_new_b = gru_step(gi_b_ref[j], h_b[...], whh_b, bhn_b)
        h_b[...] = h_new_b
        out_b_ref[j] = h_new_b

    # Resident h_n output; the values written on the last grid step are what
    # get copied back to HBM (PyTorch h_n for this layer: [fwd, bwd]).
    hn_ref[0] = h_f[...]
    hn_ref[1] = h_b[...]


def _bigru_layer(gi, whh_f, whh_b, bhn_f, bhn_b, *, tb, hp):
    T, Bp, six_hp = gi.shape
    assert six_hp == 6 * hp and T % tb == 0
    nT = T // tb
    kernel = functools.partial(_bigru_layer_kernel, tb=tb, hp=hp)
    return pl.pallas_call(
        kernel,
        out_shape=(
            jax.ShapeDtypeStruct((T, Bp, hp), jnp.float32),   # fwd hiddens
            jax.ShapeDtypeStruct((T, Bp, hp), jnp.float32),   # bwd hiddens
            jax.ShapeDtypeStruct((2, Bp, hp), jnp.float32),   # (h_n fwd, h_n bwd)
        ),
        grid_spec=pltpu.PrefetchScalarGridSpec(
            num_scalar_prefetch=0,
            grid=(nT,),
            in_specs=[
                # fwd half of gi, time blocks in increasing order.
                pl.BlockSpec((tb, Bp, 3 * hp), lambda s: (s, 0, 0)),
                # bwd half of gi, time blocks in decreasing order (reversal via
                # index_map; no jnp.flip HBM pass).
                pl.BlockSpec((tb, Bp, 3 * hp), lambda s, _n=nT: (_n - 1 - s, 0, 1)),
                pl.BlockSpec((hp, 3 * hp), lambda s: (0, 0)),
                pl.BlockSpec((hp, 3 * hp), lambda s: (0, 0)),
                pl.BlockSpec((1, hp), lambda s: (0, 0)),
                pl.BlockSpec((1, hp), lambda s: (0, 0)),
            ],
            out_specs=(
                pl.BlockSpec((tb, Bp, hp), lambda s: (s, 0, 0)),
                pl.BlockSpec((tb, Bp, hp), lambda s, _n=nT: (_n - 1 - s, 0, 0)),
                pl.BlockSpec((2, Bp, hp), lambda s: (0, 0, 0)),
            ),
            scratch_shapes=[
                pltpu.VMEM((Bp, hp), jnp.float32),   # carried fwd hidden
                pltpu.VMEM((Bp, hp), jnp.float32),   # carried bwd hidden
            ],
        ),
        compiler_params=pltpu.CompilerParams(
            dimension_semantics=("arbitrary",)),      # sequential recurrence
    )(gi, gi, whh_f, whh_b, bhn_f, bhn_b)


# ----------------------------------------------------------------------------
# fc_z + reparameterization kernel (mean/logstd weights split: no sub-128
# column slicing inside the kernel).
# ----------------------------------------------------------------------------
def _fc_z_kernel(h_ref, wm_ref, wl_ref, bm_ref, bl_ref, eps_ref,
                 mean_ref, logstd_ref, sample_ref):
    h = h_ref[...]
    z_mean = jnp.dot(h, wm_ref[...], preferred_element_type=jnp.float32) + bm_ref[...]
    z_logstd = jnp.dot(h, wl_ref[...], preferred_element_type=jnp.float32) + bl_ref[...]
    mean_ref[...] = z_mean
    logstd_ref[...] = z_logstd
    sample_ref[...] = eps_ref[...] * jnp.exp(z_logstd) + z_mean


def _fc_z(h_flat, w_mean, w_logstd, b_mean, b_logstd, eps):
    R, zd = eps.shape
    vmem = lambda: pl.BlockSpec(memory_space=pltpu.MemorySpace.VMEM)
    out_sds = jax.ShapeDtypeStruct((R, zd), jnp.float32)
    return pl.pallas_call(
        _fc_z_kernel,
        out_shape=(out_sds, out_sds, out_sds),
        in_specs=[vmem() for _ in range(6)],
        out_specs=(vmem(), vmem(), vmem()),
    )(h_flat, w_mean, w_logstd, b_mean, b_logstd, eps)


# ----------------------------------------------------------------------------
# RNNEncoder in JAX + Pallas
# ----------------------------------------------------------------------------
class RNNEncoderPallas:
    def __init__(self, sa_dim, z_dim, h_dim=128, n_layer=2, bidirectional=True,
                 key=None):
        if not bidirectional:
            # TODO(synk): unidirectional (n_dir=1) path not implemented; the
            # reference module defaults to and is used with bidirectional=True.
            raise NotImplementedError("only bidirectional=True is supported")
        if key is None:
            key = jax.random.PRNGKey(0)
        self.sa_dim = sa_dim
        self.h_dim = h_dim
        self.z_dim = z_dim
        self.n_layer = n_layer
        self.n_dir = 2
        self.h_pad = _round_up(h_dim, 128)

        def uni(k, shape, s):
            return jax.random.uniform(k, shape, jnp.float32, -s, s)

        h, hp = h_dim, self.h_pad
        kg = 1.0 / math.sqrt(h)

        def pad_gate_cols(w):
            # (rows, 3h) -> (rows, 3*hp): gate g occupies cols [g*hp, g*hp+h).
            out = jnp.zeros((w.shape[0], 3 * hp), jnp.float32)
            for g in range(3):
                out = out.at[:, g * hp:g * hp + h].set(w[:, g * h:(g + 1) * h])
            return out

        def pad_rows(w):
            return jnp.pad(w, ((0, hp - w.shape[0]), (0, 0)))

        self.raw_params = []   # unpadded params, for the pure-JAX reference
        self.layers = []
        for layer in range(n_layer):
            in_dim = sa_dim if layer == 0 else 2 * h
            raw_dirs, w_dirs, b_dirs, whhs, bhns = [], [], [], [], []
            for _ in range(2):  # forward, backward
                key, k1, k2, k3, k4 = jax.random.split(key, 5)
                w_ih = uni(k1, (in_dim, 3 * h), kg)
                w_hh = uni(k2, (h, 3 * h), kg)
                b_ih = uni(k3, (3 * h,), kg)
                b_hh = uni(k4, (3 * h,), kg)
                raw_dirs.append(dict(w_ih=w_ih, w_hh=w_hh, b_ih=b_ih, b_hh=b_hh))

                w_dirs.append(pad_gate_cols(w_ih))            # (in_dim, 3*hp)
                # Fold b_hh into the precomputed gates for r and z; the n-gate
                # hidden bias must stay inside the r*(...) product.
                b = jnp.zeros((3 * hp,), jnp.float32)
                b = b.at[0 * hp:0 * hp + h].set(b_ih[0:h] + b_hh[0:h])
                b = b.at[1 * hp:1 * hp + h].set(b_ih[h:2 * h] + b_hh[h:2 * h])
                b = b.at[2 * hp:2 * hp + h].set(b_ih[2 * h:3 * h])
                b_dirs.append(b)
                whhs.append(pad_rows(pad_gate_cols(w_hh)))    # (hp, 3*hp)
                bhns.append(jnp.zeros((1, hp), jnp.float32)
                            .at[0, :h].set(b_hh[2 * h:3 * h]))

            p = dict(
                whh_f=whhs[0], whh_b=whhs[1],
                bhn_f=bhns[0], bhn_b=bhns[1],
                b_proj=jnp.concatenate(b_dirs).reshape(1, 6 * hp),
            )
            if layer == 0:
                p['w_proj'] = jnp.concatenate(w_dirs, axis=1)     # (sa_dim, 6*hp)
            else:
                # The previous layer's output arrives as two separate
                # (T, B, hp) slabs (fwd / bwd): split the projection weights so
                # a concatenate is never materialized.
                p['w_proj_f'] = jnp.concatenate(
                    [pad_rows(w[:h]) for w in w_dirs], axis=1)    # (hp, 6*hp)
                p['w_proj_b'] = jnp.concatenate(
                    [pad_rows(w[h:]) for w in w_dirs], axis=1)    # (hp, 6*hp)
            self.layers.append(p)
            self.raw_params.append(raw_dirs)

        fc_in = h * n_layer * self.n_dir
        kf = 1.0 / math.sqrt(fc_in)
        key, k1, k2 = jax.random.split(key, 3)
        w_fc = uni(k1, (fc_in, 2 * z_dim), kf)
        b_fc = uni(k2, (2 * z_dim,), kf)
        self.w_mean, self.w_logstd = w_fc[:, :z_dim], w_fc[:, z_dim:]
        self.b_mean = b_fc[:z_dim].reshape(1, z_dim)
        self.b_logstd = b_fc[z_dim:].reshape(1, z_dim)

    def forward(self, traj, seq_lens, eps_key):
        # seq_lens intentionally unused: the reference packs the sequence but
        # runs the GRU on the padded traj, so lengths never enter the math.
        del seq_lens
        T, B, _ = traj.shape
        hp = self.h_pad
        bp = _round_up(B, 8)
        tb = _pick_tb(T)

        x = jnp.pad(traj.astype(jnp.float32), ((0, 0), (0, bp - B), (0, 0)))

        out_f = out_b = None
        h_finals = []
        for layer, p in enumerate(self.layers):
            if layer == 0:
                gi = _input_projection([x.reshape(T * bp, self.sa_dim)],
                                       [p['w_proj']], p['b_proj'])
            else:
                gi = _input_projection(
                    [out_f.reshape(T * bp, hp), out_b.reshape(T * bp, hp)],
                    [p['w_proj_f'], p['w_proj_b']], p['b_proj'])
            gi = gi.reshape(T, bp, 6 * hp)
            out_f, out_b, hn = _bigru_layer(
                gi, p['whh_f'], p['whh_b'], p['bhn_f'], p['bhn_b'], tb=tb, hp=hp)
            h_finals.append(hn)

        # PyTorch h_n order [l0_fwd, l0_bwd, l1_fwd, l1_bwd]; drop padding.
        h_n = jnp.concatenate(h_finals, axis=0)[:, :B, :self.h_dim]
        # Reproduce `h.view(-1, h_dim*n_layer*n_dir)` exactly.  NOTE: this
        # row-major view interleaves hidden states across the batch (a quirk
        # of the original PyTorch code) -- kept for exact parity.
        h_flat = jnp.reshape(h_n, (-1, self.h_dim * self.n_layer * self.n_dir))

        eps = jax.random.normal(eps_key, (h_flat.shape[0], self.z_dim),
                                jnp.float32)
        return _fc_z(h_flat, self.w_mean, self.w_logstd,
                     self.b_mean, self.b_logstd, eps)

    # ------------------------------------------------------------------
    # pure-JAX reference (no Pallas) for correctness checking
    # ------------------------------------------------------------------
    def reference_mean_logstd(self, traj):
        h = self.h_dim
        x = traj.astype(jnp.float32)
        T, B, _ = x.shape
        h_finals = []
        inp = x
        for layer in range(self.n_layer):
            outs = []
            for d in range(2):
                p = self.raw_params[layer][d]
                xs = inp if d == 0 else inp[::-1]
                hh = jnp.zeros((B, h), jnp.float32)
                seq = []
                for t in range(T):
                    gi = xs[t] @ p['w_ih'] + p['b_ih']
                    gh = hh @ p['w_hh'] + p['b_hh']
                    r = jax.nn.sigmoid(gi[:, :h] + gh[:, :h])
                    z = jax.nn.sigmoid(gi[:, h:2 * h] + gh[:, h:2 * h])
                    n = jnp.tanh(gi[:, 2 * h:] + r * gh[:, 2 * h:])
                    hh = (1.0 - z) * n + z * hh
                    seq.append(hh)
                out = jnp.stack(seq)
                h_finals.append(hh)
                if d == 1:
                    out = out[::-1]
                outs.append(out)
            inp = jnp.concatenate(outs, axis=-1)
        h_n = jnp.stack(h_finals)
        h_flat = h_n.reshape(-1, h * self.n_layer * self.n_dir)
        z_mean = h_flat @ self.w_mean + self.b_mean
        z_logstd = h_flat @ self.w_logstd + self.b_logstd
        return z_mean, z_logstd


if __name__ == "__main__":
    T, B = 8, 2
    sa_dim, h_dim, z_dim = 8, 32, 4

    root = jax.random.PRNGKey(0)
    k_param, k_traj, k_eps = jax.random.split(root, 3)

    enc = RNNEncoderPallas(sa_dim, z_dim, h_dim=h_dim, n_layer=2,
                           bidirectional=True, key=k_param)

    traj = jax.random.normal(k_traj, (T, B, sa_dim), jnp.float32)
    seq_lens = jnp.array([T, T - 2], dtype=jnp.int32)  # unused by the math

    z_mean, z_logstd, z_sample = enc.forward(traj, seq_lens, k_eps)
    jax.block_until_ready((z_mean, z_logstd, z_sample))

    assert z_mean.shape == (B, z_dim)
    assert z_logstd.shape == (B, z_dim)
    assert z_sample.shape == (B, z_dim)

    # Numerical check against a pure-JAX reference (tolerance covers MXU vs
    # XLA f32 matmul precision differences on TPU).
    with jax.default_matmul_precision("highest"):
        ref_mean, ref_logstd = enc.reference_mean_logstd(traj)
    assert bool(jnp.allclose(z_mean, ref_mean, rtol=2e-2, atol=2e-2))
    assert bool(jnp.allclose(z_logstd, ref_logstd, rtol=2e-2, atol=2e-2))

    print("KERNEL_OK")
</pallas_src>

<mosaic_0001>
module attributes {stable_mosaic.version = 11 : i64} {
  func.func @_proj1_kernel(%arg0: i32, %arg1: memref<64x8xf32, #tpu.memory_space<vmem>>, %arg2: memref<8x768xf32, #tpu.memory_space<vmem>>, %arg3: memref<1x768xf32, #tpu.memory_space<vmem>>, %arg4: memref<64x768xf32, #tpu.memory_space<vmem>>) attributes {dimension_semantics = [#tpu.dimension_semantics<parallel>], iteration_bounds = array<i64: 1>, scalar_prefetch = 0 : i64, scratch_operands = 0 : i64, tpu.core_type = #tpu.core_type<tc>, window_params = [{transform_indices = @transform_0, window_bounds = array<i64: 64, 8>}, {pipeline_mode = #tpu.pipeline_mode<synchronous>, transform_indices = @transform_1, window_bounds = array<i64: 8, 768>}, {pipeline_mode = #tpu.pipeline_mode<synchronous>, transform_indices = @transform_2, window_bounds = array<i64: 1, 768>}, {transform_indices = @transform_3, window_bounds = array<i64: 64, 768>}]} {
    %c0 = arith.constant 0 : index
    %c0_0 = arith.constant 0 : index
    %0 = vector.load %arg1[%c0, %c0_0] : memref<64x8xf32, #tpu.memory_space<vmem>>, vector<64x8xf32>
    %c0_1 = arith.constant 0 : index
    %c0_2 = arith.constant 0 : index
    %1 = vector.load %arg2[%c0_1, %c0_2] : memref<8x768xf32, #tpu.memory_space<vmem>>, vector<8x768xf32>
    %cst = arith.constant dense<0.000000e+00> : vector<64x768xf32>
    %2 = tpu.matmul %0, %1, %cst {dimension_numbers = #tpu.dot_dimension_numbers<[1], [0], [0], [1], [0, 0, 1, 1], [], []>} : vector<64x8xf32>, vector<8x768xf32>, vector<64x768xf32> -> vector<64x768xf32>
    %c0_3 = arith.constant 0 : index
    %c0_4 = arith.constant 0 : index
    %3 = vector.load %arg3[%c0_3, %c0_4] : memref<1x768xf32, #tpu.memory_space<vmem>>, vector<1x768xf32>
    %4 = vector.broadcast %3 : vector<1x768xf32> to vector<64x768xf32>
    %5 = arith.addf %2, %4 : vector<64x768xf32>
    %c0_5 = arith.constant 0 : index
    %c0_6 = arith.constant 0 : index
    %6 = vector.load %arg4[%c0_5, %c0_6] : memref<64x768xf32, #tpu.memory_space<vmem>>, vector<64x768xf32>
    tpu.vector_store %arg4[%c0_5, %c0_6], %5 {strides = array<i32>} : memref<64x768xf32, #tpu.memory_space<vmem>>, vector<64x768xf32>,
    return
  }
  func.func @transform_0(%arg0: i32) -> (i32, i32) {
    %c0_i32 = arith.constant 0 : i32
    %c0_i32_0 = arith.constant 0 : i32
    return %arg0, %c0_i32 : i32, i32
  }
  func.func @transform_1(%arg0: i32) -> (i32, i32) {
    %c0_i32 = arith.constant 0 : i32
    %c0_i32_0 = arith.constant 0 : i32
    %c0_i32_1 = arith.constant 0 : i32
    return %c0_i32, %c0_i32_0 : i32, i32
  }
  func.func @transform_2(%arg0: i32) -> (i32, i32) {
    %c0_i32 = arith.constant 0 : i32
    %c0_i32_0 = arith.constant 0 : i32
    %c0_i32_1 = arith.constant 0 : i32
    return %c0_i32, %c0_i32_0 : i32, i32
  }
  func.func @transform_3(%arg0: i32) -> (i32, i32) {
    %c0_i32 = arith.constant 0 : i32
    %c0_i32_0 = arith.constant 0 : i32
    return %arg0, %c0_i32 : i32, i32
  }
}

</mosaic_0001>

<llo_original>
// kernel: tpu_custom_call.1
$region0: #{tpu_custom_call.1}
  #allocation0 [shape = 'u32[]', space=smem, size = 0x4, offset = 0x4, fixed_abs, tag = 'smem constant byte address 0x4 - core index']
  #allocation1 [shape = 'u32[144,128]{1,0:T(1,128)}', space=vmem, size = 0x12000, scoped, tag = 'internal scratch']
  %s0 = inlined_call_operand.vmem [shape: f32[64,8], index: 0, kind: input, shape index: {}]
  %s1 = inlined_call_operand.vmem [shape: f32[8,768], index: 1, kind: input, shape index: {}]
  %s2 = inlined_call_operand.vmem [shape: f32[1,768], index: 2, kind: input, shape index: {}]
  %s3 = inlined_call_operand.hbm [shape: f32[64,768], index: 3, kind: output, shape index: {}]
  %s4 = sld [smem:[#allocation0]]
  $region22: #{tpu_custom_call.1} parent=0
    _
  %s6 = ssub.s32 1, %s4
  %s7 = scalar_select 0, %s6, %s4
  $region1: #{tpu_custom_call.1} parent=0
    #allocation2 [shape = 'u8[196608]{0}', space=vmem, size = 0x30000, scoped, tag = 'output window, operand 0, single buffered']
    #allocation3 [shape = 's32[1]{0}', space=sflag, size = 0x4, scoped, tag = 'scoped memory for tpu_custom_call.1']
    %8 = vsyncpa [#allocation3], 0
    // Predicated region
    $region2: #{tpu_custom_call.1} parent=1 // pred_check
      _
    $region3: #{tpu_custom_call.1} parent=1 // pred_check_branch
      %10 = sbr.rel (0) target = $region5
    $region4: #{tpu_custom_call.1} parent=1 // pred_region
      _
    $region5: #{tpu_custom_call.1} parent=1 // pred_fallthru
      _
    // Predicated region
    $region6: #{tpu_custom_call.1} parent=1 // pred_check
      _
    $region7: #{tpu_custom_call.1} parent=1 // pred_check_branch
      %12 = sbr.rel (0) target = $region9
    $region8: #{tpu_custom_call.1} parent=1 // pred_region
      _
    $region9: #{tpu_custom_call.1} parent=1 // pred_fallthru
      _
    // Predicated region
    $region10: #{tpu_custom_call.1} parent=1 // pred_check
      _
    $region11: #{tpu_custom_call.1} parent=1 // pred_check_branch
      %14 = sbr.rel (0) target = $region13
    $region12: #{tpu_custom_call.1} parent=1 // pred_region
      _
    $region13: #{tpu_custom_call.1} parent=1 // pred_fallthru
      _
    %v15 = vld [vmem:[%s0] sm:$0xff]
    %v16 = vld [vmem:[%s0 + $0x8] sm:$0xff]
    %v17 = vld [vmem:[%s0 + $0x10] sm:$0xff]
    %v18 = vld [vmem:[%s0 + $0x18] sm:$0xff]
    %v19 = vld [vmem:[%s0 + $0x20] sm:$0xff]
    %v20 = vld [vmem:[%s0 + $0x28] sm:$0xff]
    %v21 = vld [vmem:[%s0 + $0x30] sm:$0xff]
    %v22 = vld [vmem:[%s0 + $0x38] sm:$0xff]
    %v23 = vld [vmem:[%s1] sm:$0xff]
    %v24 = vld [vmem:[%s1 + $0x8] sm:$0xff]
    %v25 = vld [vmem:[%s1 + $0x10] sm:$0xff]
    %v26 = vld [vmem:[%s1 + $0x18] sm:$0xff]
    %v27 = vld [vmem:[%s1 + $0x20] sm:$0xff]
    %v28 = vld [vmem:[%s1 + $0x28] sm:$0xff]
    %v29 = vld [vmem:[%s2] sm:$0x3f]
    %v31 = vlaneseq
    %v32 = vshrl.u32 %v31, 7
    %v33 = vsub.s32 0, %v32
    %v34 = vrot.slane %v29, %v33
    %v35 = vlaneseq
    %v36 = vshrl.u32 %v35, 7
    %v37 = vsub.s32 1, %v36
    %v38 = vrot.slane %v29, %v37
    %v39 = vlaneseq
    %v40 = vshrl.u32 %v39, 7
    %v41 = vsub.s32 2, %v40
    %v42 = vrot.slane %v29, %v41
    %v43 = vlaneseq
    %v44 = vshrl.u32 %v43, 7
    %v45 = vsub.s32 3, %v44
    %v46 = vrot.slane %v29, %v45
    %v47 = vlaneseq
    %v48 = vshrl.u32 %v47, 7
    %v49 = vsub.s32 4, %v48
    %v50 = vrot.slane %v29, %v49
    %v51 = vlaneseq
    %v52 = vshrl.u32 %v51, 7
    %v53 = vsub.s32 5, %v52
    %v54 = vrot.slane %v29, %v53
    %vm61 = vcmask 64512
    %v63 = vsel %vm61, %v15, 0
    %v66 = vsel %vm61, %v16, 0
    %v69 = vsel %vm61, %v17, 0
    %v72 = vsel %vm61, %v18, 0
    %v75 = vsel %vm61, %v19, 0
    %v78 = vsel %vm61, %v20, 0
    %v81 = vsel %vm61, %v21, 0
    %v84 = vsel %vm61, %v22, 0
    %86 = vmatprep.subr.mxu0 0.0
    %87 = vmatpush1.msra.mxu0 0.0
    %88 = vmatprep.subr.mxu0 0.0
    %89 = vmatpush1.msra.mxu0 0.0
    %90 = vmatprep.subr.mxu0 0.0
    %91 = vmatpush1.msra.mxu0 0.0
    %92 = vmatprep.subr.mxu0 0.0
    %93 = vmatpush1.msra.mxu0 0.0
    %94 = vmatprep.subr.mxu0 0.0
    %95 = vmatpush1.msra.mxu0 0.0
    %96 = vmatprep.subr.mxu0 0.0
    %97 = vmatpush1.msra.mxu0 0.0
    %98 = vmatprep.subr.mxu0 0.0
    %99 = vmatpush1.msra.mxu0 0.0
    %100 = vmatprep.subr.mxu0 0.0
    %101 = vmatpush1.msra.mxu0 0.0
    %102 = vmatprep.subr.mxu0 0.0
    %103 = vmatpush1.msra.mxu0 0.0
    %104 = vmatprep.subr.mxu0 0.0
    %105 = vmatpush1.msra.mxu0 0.0
    %106 = vmatprep.subr.mxu0 0.0
    %107 = vmatpush1.msra.mxu0 0.0
    %108 = vmatprep.subr.mxu0 0.0
    %109 = vmatpush1.msra.mxu0 0.0
    %110 = vmatprep.subr.mxu0 0.0
    %111 = vmatpush1.msra.mxu0 0.0
    %112 = vmatprep.subr.mxu0 0.0
    %113 = vmatpush1.msra.mxu0 0.0
    %114 = vmatprep.subr.mxu0 0.0
    %115 = vmatpush1.msra.mxu0 0.0
    %116 = vmatprep.subr.mxu0 %v24
    %117 = vmatpush1.msra.mxu0 %v23
    %118 = vmatprep.subr.mxu0 0.0
    %119 = vmatpush2.msra.mxu0 0.0
    %120 = vmatprep.subr.mxu0 0.0
    %121 = vmatpush2.msra.mxu0 0.0
    %122 = vmatprep.subr.mxu0 0.0
    %123 = vmatpush2.msra.mxu0 0.0
    %124 = vmatprep.subr.mxu0 0.0
    %125 = vmatpush2.msra.mxu0 0.0
    %126 = vmatprep.subr.mxu0 0.0
    %127 = vmatpush2.msra.mxu0 0.0
    %128 = vmatprep.subr.mxu0 0.0
    %129 = vmatpush2.msra.mxu0 0.0
    %130 = vmatprep.subr.mxu0 0.0
    %131 = vmatpush2.msra.mxu0 0.0
    %132 = vmatprep.subr.mxu0 0.0
    %133 = vmatpush2.msra.mxu0 0.0
    %134 = vmatprep.subr.mxu0 0.0
    %135 = vmatpush2.msra.mxu0 0.0
    %136 = vmatprep.subr.mxu0 0.0
    %137 = vmatpush2.msra.mxu0 0.0
    %138 = vmatprep.subr.mxu0 0.0
    %139 = vmatpush2.msra.mxu0 0.0
    %140 = vmatprep.subr.mxu0 0.0
    %141 = vmatpush2.msra.mxu0 0.0
    %142 = vmatprep.subr.mxu0 0.0
    %143 = vmatpush2.msra.mxu0 0.0
    %144 = vmatprep.subr.mxu0 0.0
    %145 = vmatpush2.msra.mxu0 0.0
    %146 = vmatprep.subr.mxu0 0.0
    %147 = vmatpush2.msra.mxu0 0.0
    %148 = vmatprep.subr.mxu0 0.0
    %149 = vmatpush2.msra.mxu0 0.0
    %150 = vmatprep.mubr.f32.mxu0 0.0
    %151 = vmatmul.mubr.f32.gmra.mxu0 %v63
    %v152 = vpop.f32.mrf.mxu0
    %v153 = vadd.f32 %v34, %v152
    %v154 = vpop.f32.mrf.mxu0
    %v155 = vadd.f32 %v38, %v154
    %156 = vmatprep.mubr.f32.mxu0 0.0
    %157 = vmatmul.mubr.f32.gmra.mxu0 %v66
    %v158 = vpop.f32.mrf.mxu0
    %v159 = vadd.f32 %v34, %v158
    %v160 = vpop.f32.mrf.mxu0
    %v161 = vadd.f32 %v38, %v160
    %162 = vmatprep.mubr.f32.mxu0 0.0
    %163 = vmatmul.mubr.f32.gmra.mxu0 %v69
    %v164 = vpop.f32.mrf.mxu0
    %v165 = vadd.f32 %v34, %v164
    %v166 = vpop.f32.mrf.mxu0
    %v167 = vadd.f32 %v38, %v166
    %168 = vmatprep.mubr.f32.mxu0 0.0
    %169 = vmatmul.mubr.f32.gmra.mxu0 %v72
    %v170 = vpop.f32.mrf.mxu0
    %v171 = vadd.f32 %v34, %v170
    %v172 = vpop.f32.mrf.mxu0
    %v173 = vadd.f32 %v38, %v172
    %174 = vmatprep.mubr.f32.mxu0 0.0
    %175 = vmatmul.mubr.f32.gmra.mxu0 %v75
    %v176 = vpop.f32.mrf.mxu0
    %v177 = vadd.f32 %v34, %v176
    %v178 = vpop.f32.mrf.mxu0
    %v179 = vadd.f32 %v38, %v178
    %180 = vmatprep.mubr.f32.mxu0 0.0
    %181 = vmatmul.mubr.f32.gmra.mxu0 %v78
    %v182 = vpop.f32.mrf.mxu0
    %v183 = vadd.f32 %v34, %v182
    %v184 = vpop.f32.mrf.mxu0
    %v185 = vadd.f32 %v38, %v184
    %186 = vmatprep.mubr.f32.mxu0 0.0
    %187 = vmatmul.mubr.f32.gmra.mxu0 %v81
    %v188 = vpop.f32.mrf.mxu0
    %v189 = vadd.f32 %v34, %v188
    %v190 = vpop.f32.mrf.mxu0
    %v191 = vadd.f32 %v38, %v190
    %192 = vmatprep.mubr.f32.mxu0 0.0
    %193 = vmatmul.mubr.f32.gmra.mxu0 %v84
    %v194 = vpop.f32.mrf.mxu0
    %v195 = vadd.f32 %v34, %v194
    %v196 = vpop.f32.mrf.mxu0
    %v197 = vadd.f32 %v38, %v196
    %198 = vdwg.mxu0
    %199 = vmatprep.subr.mxu0 0.0
    %200 = vmatpush1.msra.mxu0 0.0
    %201 = vmatprep.subr.mxu0 0.0
    %202 = vmatpush1.msra.mxu0 0.0
    %203 = vmatprep.subr.mxu0 0.0
    %204 = vmatpush1.msra.mxu0 0.0
    %205 = vmatprep.subr.mxu0 0.0
    %206 = vmatpush1.msra.mxu0 0.0
    %207 = vmatprep.subr.mxu0 0.0
    %208 = vmatpush1.msra.mxu0 0.0
    %209 = vmatprep.subr.mxu0 0.0
    %210 = vmatpush1.msra.mxu0 0.0
    %211 = vmatprep.subr.mxu0 0.0
    %212 = vmatpush1.msra.mxu0 0.0
    %213 = vmatprep.subr.mxu0 0.0
    %214 = vmatpush1.msra.mxu0 0.0
    %215 = vmatprep.subr.mxu0 0.0
    %216 = vmatpush1.msra.mxu0 0.0
    %217 = vmatprep.subr.mxu0 0.0
    %218 = vmatpush1.msra.mxu0 0.0
    %219 = vmatprep.subr.mxu0 0.0
    %220 = vmatpush1.msra.mxu0 0.0
    %221 = vmatprep.subr.mxu0 0.0
    %222 = vmatpush1.msra.mxu0 0.0
    %223 = vmatprep.subr.mxu0 0.0
    %224 = vmatpush1.msra.mxu0 0.0
    %225 = vmatprep.subr.mxu0 0.0
    %226 = vmatpush1.msra.mxu0 0.0
    %227 = vmatprep.subr.mxu0 0.0
    %228 = vmatpush1.msra.mxu0 0.0
    %229 = vmatprep.subr.mxu0 %v26
    %230 = vmatpush1.msra.mxu0 %v25
    %231 = vmatprep.subr.mxu0 0.0
    %232 = vmatpush2.msra.mxu0 0.0
    %233 = vmatprep.subr.mxu0 0.0
    %234 = vmatpush2.msra.mxu0 0.0
    %235 = vmatprep.subr.mxu0 0.0
    %236 = vmatpush2.msra.mxu0 0.0
    %237 = vmatprep.subr.mxu0 0.0
    %238 = vmatpush2.msra.mxu0 0.0
    %239 = vmatprep.subr.mxu0 0.0
    %240 = vmatpush2.msra.mxu0 0.0
    %241 = vmatprep.subr.mxu0 0.0
    %242 = vmatpush2.msra.mxu0 0.0
    %243 = vmatprep.subr.mxu0 0.0
    %244 = vmatpush2.msra.mxu0 0.0
    %245 = vmatprep.subr.mxu0 0.0
    %246 = vmatpush2.msra.mxu0 0.0
    %247 = vmatprep.subr.mxu0 0.0
    %248 = vmatpush2.msra.mxu0 0.0
    %249 = vmatprep.subr.mxu0 0.0
    %250 = vmatpush2.msra.mxu0 0.0
    %251 = vmatprep.subr.mxu0 0.0
    %252 = vmatpush2.msra.mxu0 0.0
    %253 = vmatprep.subr.mxu0 0.0
    %254 = vmatpush2.msra.mxu0 0.0
    %255 = vmatprep.subr.mxu0 0.0
    %256 = vmatpush2.msra.mxu0 0.0
    %257 = vmatprep.subr.mxu0 0.0
    %258 = vmatpush2.msra.mxu0 0.0
    %259 = vmatprep.subr.mxu0 0.0
    %260 = vmatpush2.msra.mxu0 0.0
    %261 = vmatprep.subr.mxu0 0.0
    %262 = vmatpush2.msra.mxu0 0.0
    %263 = vmatprep.mubr.f32.mxu0 0.0
    %264 = vmatmul.mubr.f32.gmra.mxu0 %v63
    %v265 = vpop.f32.mrf.mxu0
    %v266 = vadd.f32 %v42, %v265
    %v267 = vpop.f32.mrf.mxu0
    %v268 = vadd.f32 %v46, %v267
    %269 = vmatprep.mubr.f32.mxu0 0.0
    %270 = vmatmul.mubr.f32.gmra.mxu0 %v66
    %v271 = vpop.f32.mrf.mxu0
    %v272 = vadd.f32 %v42, %v271
    %v273 = vpop.f32.mrf.mxu0
    %v274 = vadd.f32 %v46, %v273
    %275 = vmatprep.mubr.f32.mxu0 0.0
    %276 = vmatmul.mubr.f32.gmra.mxu0 %v69
    %v277 = vpop.f32.mrf.mxu0
    %v278 = vadd.f32 %v42, %v277
    %v279 = vpop.f32.mrf.mxu0
    %v280 = vadd.f32 %v46, %v279
    %281 = vmatprep.mubr.f32.mxu0 0.0
    %282 = vmatmul.mubr.f32.gmra.mxu0 %v72
    %v283 = vpop.f32.mrf.mxu0
    %v284 = vadd.f32 %v42, %v283
    %v285 = vpop.f32.mrf.mxu0
    %v286 = vadd.f32 %v46, %v285
    %287 = vmatprep.mubr.f32.mxu0 0.0
    %288 = vmatmul.mubr.f32.gmra.mxu0 %v75
    %v289 = vpop.f32.mrf.mxu0
    %v290 = vadd.f32 %v42, %v289
    %v291 = vpop.f32.mrf.mxu0
    %v292 = vadd.f32 %v46, %v291
    %293 = vmatprep.mubr.f32.mxu0 0.0
    %294 = vmatmul.mubr.f32.gmra.mxu0 %v78
    %v295 = vpop.f32.mrf.mxu0
    %v296 = vadd.f32 %v42, %v295
    %v297 = vpop.f32.mrf.mxu0
    %v298 = vadd.f32 %v46, %v297
    %299 = vmatprep.mubr.f32.mxu0 0.0
    %300 = vmatmul.mubr.f32.gmra.mxu0 %v81
    %v301 = vpop.f32.mrf.mxu0
    %v302 = vadd.f32 %v42, %v301
    %v303 = vpop.f32.mrf.mxu0
    %v304 = vadd.f32 %v46, %v303
    %305 = vmatprep.mubr.f32.mxu0 0.0
    %306 = vmatmul.mubr.f32.gmra.mxu0 %v84
    %v307 = vpop.f32.mrf.mxu0
    %v308 = vadd.f32 %v42, %v307
    %v309 = vpop.f32.mrf.mxu0
    %v310 = vadd.f32 %v46, %v309
    %311 = vdwg.mxu0
    %312 = vmatprep.subr.mxu0 0.0
    %313 = vmatpush1.msra.mxu0 0.0
    %314 = vmatprep.subr.mxu0 0.0
    %315 = vmatpush1.msra.mxu0 0.0
    %316 = vmatprep.subr.mxu0 0.0
    %317 = vmatpush1.msra.mxu0 0.0
    %318 = vmatprep.subr.mxu0 0.0
    %319 = vmatpush1.msra.mxu0 0.0
    %320 = vmatprep.subr.mxu0 0.0
    %321 = vmatpush1.msra.mxu0 0.0
    %322 = vmatprep.subr.mxu0 0.0
    %323 = vmatpush1.msra.mxu0 0.0
    %324 = vmatprep.subr.mxu0 0.0
    %325 = vmatpush1.msra.mxu0 0.0
    %326 = vmatprep.subr.mxu0 0.0
    %327 = vmatpush1.msra.mxu0 0.0
    %328 = vmatprep.subr.mxu0 0.0
    %329 = vmatpush1.msra.mxu0 0.0
    %330 = vmatprep.subr.mxu0 0.0
    %331 = vmatpush1.msra.mxu0 0.0
    %332 = vmatprep.subr.mxu0 0.0
    %333 = vmatpush1.msra.mxu0 0.0
    %334 = vmatprep.subr.mxu0 0.0
    %335 = vmatpush1.msra.mxu0 0.0
    %336 = vmatprep.subr.mxu0 0.0
    %337 = vmatpush1.msra.mxu0 0.0
    %338 = vmatprep.subr.mxu0 0.0
    %339 = vmatpush1.msra.mxu0 0.0
    %340 = vmatprep.subr.mxu0 0.0
    %341 = vmatpush1.msra.mxu0 0.0
    %342 = vmatprep.subr.mxu0 %v28
    %343 = vmatpush1.msra.mxu0 %v27
    %344 = vmatprep.subr.mxu0 0.0
    %345 = vmatpush2.msra.mxu0 0.0
    %346 = vmatprep.subr.mxu0 0.0
    %347 = vmatpush2.msra.mxu0 0.0
    %348 = vmatprep.subr.mxu0 0.0
    %349 = vmatpush2.msra.mxu0 0.0
    %350 = vmatprep.subr.mxu0 0.0
    %351 = vmatpush2.msra.mxu0 0.0
    %352 = vmatprep.subr.mxu0 0.0
    %353 = vmatpush2.msra.mxu0 0.0
    %354 = vmatprep.subr.mxu0 0.0
    %355 = vmatpush2.msra.mxu0 0.0
    %356 = vmatprep.subr.mxu0 0.0
    %357 = vmatpush2.msra.mxu0 0.0
    %358 = vmatprep.subr.mxu0 0.0
    %359 = vmatpush2.msra.mxu0 0.0
    %360 = vmatprep.subr.mxu0 0.0
    %361 = vmatpush2.msra.mxu0 0.0
    %362 = vmatprep.subr.mxu0 0.0
    %363 = vmatpush2.msra.mxu0 0.0
    %364 = vmatprep.subr.mxu0 0.0
    %365 = vmatpush2.msra.mxu0 0.0
    %366 = vmatprep.subr.mxu0 0.0
    %367 = vmatpush2.msra.mxu0 0.0
    %368 = vmatprep.subr.mxu0 0.0
    %369 = vmatpush2.msra.mxu0 0.0
    %370 = vmatprep.subr.mxu0 0.0
    %371 = vmatpush2.msra.mxu0 0.0
    %372 = vmatprep.subr.mxu0 0.0
    %373 = vmatpush2.msra.mxu0 0.0
    %374 = vmatprep.subr.mxu0 0.0
    %375 = vmatpush2.msra.mxu0 0.0
    %376 = vmatprep.mubr.f32.mxu0 0.0
    %377 = vmatmul.mubr.f32.gmra.mxu0 %v63
    %v378 = vpop.f32.mrf.mxu0
    %v379 = vadd.f32 %v50, %v378
    %v380 = vpop.f32.mrf.mxu0
    %v381 = vadd.f32 %v54, %v380
    %382 = vmatprep.mubr.f32.mxu0 0.0
    %383 = vmatmul.mubr.f32.gmra.mxu0 %v66
    %v384 = vpop.f32.mrf.mxu0
    %v385 = vadd.f32 %v50, %v384
    %v386 = vpop.f32.mrf.mxu0
    %v387 = vadd.f32 %v54, %v386
    %388 = vmatprep.mubr.f32.mxu0 0.0
    %389 = vmatmul.mubr.f32.gmra.mxu0 %v69
    %v390 = vpop.f32.mrf.mxu0
    %v391 = vadd.f32 %v50, %v390
    %v392 = vpop.f32.mrf.mxu0
    %v393 = vadd.f32 %v54, %v392
    %394 = vmatprep.mubr.f32.mxu0 0.0
    %395 = vmatmul.mubr.f32.gmra.mxu0 %v72
    %v396 = vpop.f32.mrf.mxu0
    %v397 = vadd.f32 %v50, %v396
    %v398 = vpop.f32.mrf.mxu0
    %v399 = vadd.f32 %v54, %v398
    %400 = vmatprep.mubr.f32.mxu0 0.0
    %401 = vmatmul.mubr.f32.gmra.mxu0 %v75
    %v402 = vpop.f32.mrf.mxu0
    %v403 = vadd.f32 %v50, %v402
    %v404 = vpop.f32.mrf.mxu0
    %v405 = vadd.f32 %v54, %v404
    %406 = vmatprep.mubr.f32.mxu0 0.0
    %407 = vmatmul.mubr.f32.gmra.mxu0 %v78
    %v408 = vpop.f32.mrf.mxu0
    %v409 = vadd.f32 %v50, %v408
    %v410 = vpop.f32.mrf.mxu0
    %v411 = vadd.f32 %v54, %v410
    %412 = vmatprep.mubr.f32.mxu0 0.0
    %413 = vmatmul.mubr.f32.gmra.mxu0 %v81
    %v414 = vpop.f32.mrf.mxu0
    %v415 = vadd.f32 %v50, %v414
    %v416 = vpop.f32.mrf.mxu0
    %v417 = vadd.f32 %v54, %v416
    %418 = vmatprep.mubr.f32.mxu0 0.0
    %419 = vmatmul.mubr.f32.gmra.mxu0 %v84
    %v420 = vpop.f32.mrf.mxu0
    %v421 = vadd.f32 %v50, %v420
    %v422 = vpop.f32.mrf.mxu0
    %v423 = vadd.f32 %v54, %v422
    %424 = vdwg.mxu0
    %425 = vst [vmem:[#allocation2] sm:$0xff] %v153
    %426 = vst [vmem:[#allocation2 + $0x8] sm:$0xff] %v155
    %427 = vst [vmem:[#allocation2 + $0x10] sm:$0xff] %v266
    %428 = vst [vmem:[#allocation2 + $0x18] sm:$0xff] %v268
    %429 = vst [vmem:[#allocation2 + $0x20] sm:$0xff] %v379
    %430 = vst [vmem:[#allocation2 + $0x28] sm:$0xff] %v381
    %431 = vst [vmem:[#allocation2 + $0x30] sm:$0xff] %v159
    %432 = vst [vmem:[#allocation2 + $0x38] sm:$0xff] %v161
    %433 = vst [vmem:[#allocation2 + $0x40] sm:$0xff] %v272
    %434 = vst [vmem:[#allocation2 + $0x48] sm:$0xff] %v274
    %435 = vst [vmem:[#allocation2 + $0x50] sm:$0xff] %v385
    %436 = vst [vmem:[#allocation2 + $0x58] sm:$0xff] %v387
    %437 = vst [vmem:[#allocation2 + $0x60] sm:$0xff] %v165
    %438 = vst [vmem:[#allocation2 + $0x68] sm:$0xff] %v167
    %439 = vst [vmem:[#allocation2 + $0x70] sm:$0xff] %v278
    %440 = vst [vmem:[#allocation2 + $0x78] sm:$0xff] %v280
    %441 = vst [vmem:[#allocation2 + $0x80] sm:$0xff] %v391
    %442 = vst [vmem:[#allocation2 + $0x88] sm:$0xff] %v393
    %443 = vst [vmem:[#allocation2 + $0x90] sm:$0xff] %v171
    %444 = vst [vmem:[#allocation2 + $0x98] sm:$0xff] %v173
    %445 = vst [vmem:[#allocation2 + $0xa0] sm:$0xff] %v284
    %446 = vst [vmem:[#allocation2 + $0xa8] sm:$0xff] %v286
    %447 = vst [vmem:[#allocation2 + $0xb0] sm:$0xff] %v397
    %448 = vst [vmem:[#allocation2 + $0xb8] sm:$0xff] %v399
    %449 = vst [vmem:[#allocation2 + $0xc0] sm:$0xff] %v177
    %450 = vst [vmem:[#allocation2 + $0xc8] sm:$0xff] %v179
    %451 = vst [vmem:[#allocation2 + $0xd0] sm:$0xff] %v290
    %452 = vst [vmem:[#allocation2 + $0xd8] sm:$0xff] %v292
    %453 = vst [vmem:[#allocation2 + $0xe0] sm:$0xff] %v403
    %454 = vst [vmem:[#allocation2 + $0xe8] sm:$0xff] %v405
    %455 = vst [vmem:[#allocation2 + $0xf0] sm:$0xff] %v183
    %456 = vst [vmem:[#allocation2 + $0xf8] sm:$0xff] %v185
    %457 = vst [vmem:[#allocation2 + $0x100] sm:$0xff] %v296
    %458 = vst [vmem:[#allocation2 + $0x108] sm:$0xff] %v298
    %459 = vst [vmem:[#allocation2 + $0x110] sm:$0xff] %v409
    %460 = vst [vmem:[#allocation2 + $0x118] sm:$0xff] %v411
    %461 = vst [vmem:[#allocation2 + $0x120] sm:$0xff] %v189
    %462 = vst [vmem:[#allocation2 + $0x128] sm:$0xff] %v191
    %463 = vst [vmem:[#allocation2 + $0x130] sm:$0xff] %v302
    %464 = vst [vmem:[#allocation2 + $0x138] sm:$0xff] %v304
    %465 = vst [vmem:[#allocation2 + $0x140] sm:$0xff] %v415
    %466 = vst [vmem:[#allocation2 + $0x148] sm:$0xff] %v417
    %467 = vst [vmem:[#allocation2 + $0x150] sm:$0xff] %v195
    %468 = vst [vmem:[#allocation2 + $0x158] sm:$0xff] %v197
    %469 = vst [vmem:[#allocation2 + $0x160] sm:$0xff] %v308
    %470 = vst [vmem:[#allocation2 + $0x168] sm:$0xff] %v310
    %471 = vst [vmem:[#allocation2 + $0x170] sm:$0xff] %v421
    %472 = vst [vmem:[#allocation2 + $0x178] sm:$0xff] %v423
    // Predicated region
    $region14: #{tpu_custom_call.1} parent=1 // pred_check
      _
    $region15: #{tpu_custom_call.1} parent=1 // pred_check_branch
      %474 = sbr.rel (0) target = $region17
    $region16: #{tpu_custom_call.1} parent=1 // pred_region
      %s476 = ssub.s32 6144, 6144
      %477 = vsyncadd [#allocation3], %s476
      %s478 = sshll.u32 [#allocation2], 4
      %s479 = int_to_ptr.vmem [resolvable:$true] %s478
      %484 = dma.vmem_to_hbm [thread:$0]  %s479, 6144, %s3, [#allocation3], 768, 768, 48
    $region17: #{tpu_custom_call.1} parent=1 // pred_fallthru
      _
    // Predicated region
    $region18: #{tpu_custom_call.1} parent=1 // pred_check
      _
    $region19: #{tpu_custom_call.1} parent=1 // pred_check_branch
      %486 = sbr.rel (0) target = $region21
    $region20: #{tpu_custom_call.1} parent=1 // pred_region
      %487 = dma.done [#allocation3], 6144
    $region21: #{tpu_custom_call.1} parent=1 // pred_fallthru
      _
    %488 = vsyncpa [#allocation3], 1

</llo_original>
